<compile_context>
chip_gen: v6e
topology: v6e:2x2x1
jax: 0.10.0
libtpu: 0.0.40
codegen_flags: <defaults>
</compile_context>

<pallas_src>
import jax
import jax.numpy as jnp
from jax.experimental import pallas as pl
from jax.experimental.pallas import tpu as pltpu


def _embedding_block_kernel(x_ref, w_ref, o_ref):
    # MXU matmul with f32 accumulation, ReLU on the f32 accumulator (VPU),
    # single cast to the output dtype at the end.
    acc = jnp.dot(x_ref[...], w_ref[...], preferred_element_type=jnp.float32)
    o_ref[...] = jnp.maximum(acc, 0.0).astype(o_ref.dtype)


def _choose_tm(n, f, e_pad, in_bytes, w_bytes, out_bytes,
               vmem_budget=24 * 1024 * 1024):
    """Pick a row tile: as big as the VMEM budget allows, multiple of 8,
    capped at 2048, and (when possible) small enough for >= 2 grid steps
    so megacore (v7x) can shard rows across TensorCores."""
    # Double-buffered x tile + double-buffered out tile per row; weight
    # counted twice as a worst case even though its index_map is constant.
    per_row = 2 * f * in_bytes + 2 * e_pad * out_bytes
    weight_cost = 2 * f * e_pad * w_bytes
    tm = (vmem_budget - weight_cost) // per_row
    tm = max(8, min(int(tm), 2048))
    if n > 8 and tm >= n:
        # Guarantee at least 2 grid steps so both v7x TensorCores get work.
        tm = pl.cdiv(n, 2)
    tm = max(8, (tm // 8) * 8)              # sublane alignment (f32: 8 rows)
    n_pad8 = ((n + 7) // 8) * 8
    return min(tm, n_pad8)


def embedding_block(x, w_t, *, tm=None, compute_dtype=None, pad_lanes=True):
    """relu(x @ w_t).

    x:   [N, F]
    w_t: [F, E]  (transposed torch Linear weight)
    compute_dtype: e.g. jnp.bfloat16 to halve HBM traffic (accumulation stays f32).
    pad_lanes: zero-pad E up to a multiple of 128 inside the call so output
               stores are lane-dense (unmasked); real columns sliced back out.
    """
    N, F = x.shape
    F2, E = w_t.shape
    assert F == F2, "weight must be [feature_length, embedding_length]"

    out_dtype = x.dtype
    if compute_dtype is not None:
        x = x.astype(compute_dtype)
        w_t = w_t.astype(compute_dtype)
        out_dtype = compute_dtype

    # Lane-dense output: pad E to a multiple of 128 (padded cols are zeros,
    # relu(0)=0, and we slice them off after the call).
    E_pad = E
    if pad_lanes and E % 128 != 0:
        E_pad = ((E + 127) // 128) * 128
        w_t = jnp.pad(w_t, ((0, 0), (0, E_pad - E)))

    in_bytes = jnp.dtype(x.dtype).itemsize
    w_bytes = jnp.dtype(w_t.dtype).itemsize
    out_bytes = jnp.dtype(out_dtype).itemsize

    if tm is None:
        tm = _choose_tm(N, F, E_pad, in_bytes, w_bytes, out_bytes)
    tm = max(8, (int(tm) // 8) * 8)

    grid = (pl.cdiv(N, tm),)

    out = pl.pallas_call(
        _embedding_block_kernel,
        out_shape=jax.ShapeDtypeStruct((N, E_pad), out_dtype),
        grid_spec=pltpu.PrefetchScalarGridSpec(
            num_scalar_prefetch=0,
            grid=grid,
            in_specs=[
                # Row tile of x, streamed across the grid.
                pl.BlockSpec((tm, F), lambda i: (i, 0)),
                # Full weight; constant index_map -> compiler keeps a single
                # resident VMEM copy (no per-step re-DMA / double-buffer).
                pl.BlockSpec((F, E_pad), lambda i: (0, 0)),
            ],
            out_specs=pl.BlockSpec((tm, E_pad), lambda i: (i, 0)),
        ),
        compiler_params=pltpu.CompilerParams(
            dimension_semantics=("parallel",),       # rows are independent
            vmem_limit_bytes=48 * 1024 * 1024,       # > scoped defaults, < v7x physical
        ),
    )(x, w_t)

    return out[:, :E] if E_pad != E else out


def reference(x, w_t):
    return jnp.maximum(x @ w_t, 0.0)


if __name__ == "__main__":
    key = jax.random.PRNGKey(0)
    k_x, k_w, k_x2 = jax.random.split(key, 3)

    # Module shapes: feature_length=32, embedding_length=64.
    F, E = 32, 64

    # Deterministic weight mimicking torch.nn.Linear's uniform(-1/sqrt(F), 1/sqrt(F)).
    bound = 1.0 / (F ** 0.5)
    w = jax.random.uniform(k_w, (E, F), dtype=jnp.float32, minval=-bound, maxval=bound)
    w_t = w.T  # [F, E]

    # --- Small shape (matches the module's toy usage), f32, strict check ---
    N_small = 8
    x_small = jax.random.normal(k_x, (N_small, F), dtype=jnp.float32)
    out_small = jax.block_until_ready(embedding_block(x_small, w_t))
    ref_small = reference(x_small, w_t)
    assert out_small.shape == (N_small, E)
    assert jnp.allclose(out_small, ref_small, atol=1e-5, rtol=1e-5), "f32 mismatch"

    # --- Larger batch exercising multi-step grid (megacore path) ---
    N_big = 2048
    x_big = jax.random.normal(k_x2, (N_big, F), dtype=jnp.float32)
    out_big = jax.block_until_ready(embedding_block(x_big, w_t))
    ref_big = reference(x_big, w_t)
    assert out_big.shape == (N_big, E)
    assert jnp.allclose(out_big, ref_big, atol=1e-5, rtol=1e-5), "f32 tiled mismatch"

    # --- bf16 inputs (halved HBM traffic), f32 accumulation, loose tolerance ---
    out_bf16 = jax.block_until_ready(
        embedding_block(x_big, w_t, compute_dtype=jnp.bfloat16))
    assert out_bf16.shape == (N_big, E)
    assert jnp.allclose(out_bf16.astype(jnp.float32), ref_big,
                        atol=5e-2, rtol=5e-2), "bf16 mismatch"

    print("KERNEL_OK")
</pallas_src>

<mosaic_0001>
module attributes {stable_mosaic.version = 11 : i64} {
  func.func @_embedding_block_kernel(%arg0: i32, %arg1: memref<8x32xf32, #tpu.memory_space<vmem>>, %arg2: memref<32x128xf32, #tpu.memory_space<vmem>>, %arg3: memref<8x128xf32, #tpu.memory_space<vmem>>) attributes {dimension_semantics = [#tpu.dimension_semantics<parallel>], iteration_bounds = array<i64: 1>, scalar_prefetch = 0 : i64, scratch_operands = 0 : i64, tpu.core_type = #tpu.core_type<tc>, window_params = [{transform_indices = @transform_0, window_bounds = array<i64: 8, 32>}, {pipeline_mode = #tpu.pipeline_mode<synchronous>, transform_indices = @transform_1, window_bounds = array<i64: 32, 128>}, {transform_indices = @transform_2, window_bounds = array<i64: 8, 128>}]} {
    %c0 = arith.constant 0 : index
    %c0_0 = arith.constant 0 : index
    %0 = vector.load %arg1[%c0, %c0_0] : memref<8x32xf32, #tpu.memory_space<vmem>>, vector<8x32xf32>
    %c0_1 = arith.constant 0 : index
    %c0_2 = arith.constant 0 : index
    %1 = vector.load %arg2[%c0_1, %c0_2] : memref<32x128xf32, #tpu.memory_space<vmem>>, vector<32x128xf32>
    %cst = arith.constant dense<0.000000e+00> : vector<8x128xf32>
    %2 = tpu.matmul %0, %1, %cst {dimension_numbers = #tpu.dot_dimension_numbers<[1], [0], [0], [1], [0, 0, 1, 1], [], []>} : vector<8x32xf32>, vector<32x128xf32>, vector<8x128xf32> -> vector<8x128xf32>
    %cst_3 = arith.constant 0.000000e+00 : f32
    %3 = vector.broadcast %cst_3 : f32 to vector<8x128xf32>
    %4 = arith.maximumf %2, %3 : vector<8x128xf32>
    %c0_4 = arith.constant 0 : index
    %c0_5 = arith.constant 0 : index
    %5 = vector.load %arg3[%c0_4, %c0_5] : memref<8x128xf32, #tpu.memory_space<vmem>>, vector<8x128xf32>
    tpu.vector_store %arg3[%c0_4, %c0_5], %4 {strides = array<i32>} : memref<8x128xf32, #tpu.memory_space<vmem>>, vector<8x128xf32>,
    return
  }
  func.func @transform_0(%arg0: i32) -> (i32, i32) {
    %c0_i32 = arith.constant 0 : i32
    %c0_i32_0 = arith.constant 0 : i32
    return %arg0, %c0_i32 : i32, i32
  }
  func.func @transform_1(%arg0: i32) -> (i32, i32) {
    %c0_i32 = arith.constant 0 : i32
    %c0_i32_0 = arith.constant 0 : i32
    %c0_i32_1 = arith.constant 0 : i32
    return %c0_i32, %c0_i32_0 : i32, i32
  }
  func.func @transform_2(%arg0: i32) -> (i32, i32) {
    %c0_i32 = arith.constant 0 : i32
    %c0_i32_0 = arith.constant 0 : i32
    return %arg0, %c0_i32 : i32, i32
  }
}

</mosaic_0001>

<llo_original>
// kernel: tpu_custom_call.1
$region0: #{tpu_custom_call.1}
  #allocation0 [shape = 'u32[]', space=smem, size = 0x4, offset = 0x4, fixed_abs, tag = 'smem constant byte address 0x4 - core index']
  #allocation1 [shape = 'u32[144,128]{1,0:T(1,128)}', space=vmem, size = 0x12000, scoped, tag = 'internal scratch']
  %s0 = inlined_call_operand.hbm [shape: f32[8,32], index: 0, kind: input, shape index: {}]
  %s1 = inlined_call_operand.hbm [shape: f32[32,128], index: 1, kind: input, shape index: {}]
  %s2 = inlined_call_operand.hbm [shape: f32[8,128], index: 2, kind: output, shape index: {}]
  %s3 = sld [smem:[#allocation0]]
  $region26: #{tpu_custom_call.1} parent=0
    _
  %s5 = ssub.s32 1, %s3
  %s6 = scalar_select 0, %s5, %s3
  $region1: #{tpu_custom_call.1} parent=0
    #allocation2 [shape = 'u8[4096]{0}', space=vmem, size = 0x1000, scoped, tag = 'input window, operand 0, single buffered']
    #allocation3 [shape = 's32[1]{0}', space=sflag, size = 0x4, scoped, tag = 'scoped memory for tpu_custom_call.1']
    #allocation4 [shape = 's32[1]{0}', space=sflag, size = 0x4, scoped, tag = 'scoped memory for tpu_custom_call.1']
    #allocation5 [shape = 'u8[16384]{0}', space=vmem, size = 0x4000, scoped, tag = 'input window, operand 1, single buffered']
    #allocation6 [shape = 's32[1]{0}', space=sflag, size = 0x4, scoped, tag = 'scoped memory for tpu_custom_call.1']
    #allocation7 [shape = 'u8[4096]{0}', space=vmem, size = 0x1000, scoped, tag = 'output window, operand 0, single buffered']
    %7 = vsyncpa [#allocation3], 0
    %8 = vsyncpa [#allocation6], 0
    %9 = vsyncpa [#allocation4], 0
    // Predicated region
    $region2: #{tpu_custom_call.1} parent=1 // pred_check
      _
    $region3: #{tpu_custom_call.1} parent=1 // pred_check_branch
      %11 = sbr.rel (0) target = $region5
    $region4: #{tpu_custom_call.1} parent=1 // pred_region
      %s13 = ssub.s32 128, 128
      %14 = vsyncadd [#allocation3], %s13
      %s16 = sshll.u32 [#allocation2], 4
      %s17 = int_to_ptr.vmem [resolvable:$true] %s16
      %19 = dma.hbm_to_vmem [thread:$0]  %s0, 128, %s17, [#allocation3]
    $region5: #{tpu_custom_call.1} parent=1 // pred_fallthru
      _
    // Predicated region
    $region6: #{tpu_custom_call.1} parent=1 // pred_check
      _
    $region7: #{tpu_custom_call.1} parent=1 // pred_check_branch
      %21 = sbr.rel (0) target = $region9
    $region8: #{tpu_custom_call.1} parent=1 // pred_region
      %s23 = ssub.s32 512, 512
      %24 = vsyncadd [#allocation6], %s23
      %s25 = sshll.u32 [#allocation5], 4
      %s26 = int_to_ptr.vmem [resolvable:$true] %s25
      %31 = dma.hbm_to_vmem [thread:$0]  %s1, 512, %s26, [#allocation6], 128, 128, 8
    $region9: #{tpu_custom_call.1} parent=1 // pred_fallthru
      _
    // Predicated region
    $region10: #{tpu_custom_call.1} parent=1 // pred_check
      _
    $region11: #{tpu_custom_call.1} parent=1 // pred_check_branch
      %33 = sbr.rel (0) target = $region13
    $region12: #{tpu_custom_call.1} parent=1 // pred_region
      %34 = dma.done [#allocation3], 128
    $region13: #{tpu_custom_call.1} parent=1 // pred_fallthru
      _
    // Predicated region
    $region14: #{tpu_custom_call.1} parent=1 // pred_check
      _
    $region15: #{tpu_custom_call.1} parent=1 // pred_check_branch
      %36 = sbr.rel (0) target = $region17
    $region16: #{tpu_custom_call.1} parent=1 // pred_region
      %37 = dma.done [#allocation6], 512
    $region17: #{tpu_custom_call.1} parent=1 // pred_fallthru
      _
    %v38 = vld [vmem:[#allocation2] sm:$0xff]
    %v39 = vld [vmem:[#allocation5] sm:$0xff]
    %v40 = vld [vmem:[#allocation5 + $0x8] sm:$0xff]
    %v41 = vld [vmem:[#allocation5 + $0x10] sm:$0xff]
    %v42 = vld [vmem:[#allocation5 + $0x18] sm:$0xff]
    %vm43 = vcmask 261120
    %v45 = vsel %vm43, %v38, 0
    %47 = vmatprep.subr.mxu0 0.0
    %48 = vmatpush1.msra.mxu0 0.0
    %49 = vmatprep.subr.mxu0 0.0
    %50 = vmatpush1.msra.mxu0 0.0
    %51 = vmatprep.subr.mxu0 0.0
    %52 = vmatpush1.msra.mxu0 0.0
    %53 = vmatprep.subr.mxu0 0.0
    %54 = vmatpush1.msra.mxu0 0.0
    %55 = vmatprep.subr.mxu0 0.0
    %56 = vmatpush1.msra.mxu0 0.0
    %57 = vmatprep.subr.mxu0 0.0
    %58 = vmatpush1.msra.mxu0 0.0
    %59 = vmatprep.subr.mxu0 0.0
    %60 = vmatpush1.msra.mxu0 0.0
    %61 = vmatprep.subr.mxu0 0.0
    %62 = vmatpush1.msra.mxu0 0.0
    %63 = vmatprep.subr.mxu0 0.0
    %64 = vmatpush1.msra.mxu0 0.0
    %65 = vmatprep.subr.mxu0 0.0
    %66 = vmatpush1.msra.mxu0 0.0
    %67 = vmatprep.subr.mxu0 0.0
    %68 = vmatpush1.msra.mxu0 0.0
    %69 = vmatprep.subr.mxu0 0.0
    %70 = vmatpush1.msra.mxu0 0.0
    %71 = vmatprep.subr.mxu0 0.0
    %72 = vmatpush1.msra.mxu0 %v42
    %73 = vmatprep.subr.mxu0 0.0
    %74 = vmatpush1.msra.mxu0 %v41
    %75 = vmatprep.subr.mxu0 0.0
    %76 = vmatpush1.msra.mxu0 %v40
    %77 = vmatprep.subr.mxu0 0.0
    %78 = vmatpush1.msra.mxu0 %v39
    %79 = vmatprep.subr.mxu0 0.0
    %80 = vmatpush2.msra.mxu0 0.0
    %81 = vmatprep.subr.mxu0 0.0
    %82 = vmatpush2.msra.mxu0 0.0
    %83 = vmatprep.subr.mxu0 0.0
    %84 = vmatpush2.msra.mxu0 0.0
    %85 = vmatprep.subr.mxu0 0.0
    %86 = vmatpush2.msra.mxu0 0.0
    %87 = vmatprep.subr.mxu0 0.0
    %88 = vmatpush2.msra.mxu0 0.0
    %89 = vmatprep.subr.mxu0 0.0
    %90 = vmatpush2.msra.mxu0 0.0
    %91 = vmatprep.subr.mxu0 0.0
    %92 = vmatpush2.msra.mxu0 0.0
    %93 = vmatprep.subr.mxu0 0.0
    %94 = vmatpush2.msra.mxu0 0.0
    %95 = vmatprep.subr.mxu0 0.0
    %96 = vmatpush2.msra.mxu0 0.0
    %97 = vmatprep.subr.mxu0 0.0
    %98 = vmatpush2.msra.mxu0 0.0
    %99 = vmatprep.subr.mxu0 0.0
    %100 = vmatpush2.msra.mxu0 0.0
    %101 = vmatprep.subr.mxu0 0.0
    %102 = vmatpush2.msra.mxu0 0.0
    %103 = vmatprep.subr.mxu0 0.0
    %104 = vmatpush2.msra.mxu0 0.0
    %105 = vmatprep.subr.mxu0 0.0
    %106 = vmatpush2.msra.mxu0 0.0
    %107 = vmatprep.subr.mxu0 0.0
    %108 = vmatpush2.msra.mxu0 0.0
    %109 = vmatprep.subr.mxu0 0.0
    %110 = vmatpush2.msra.mxu0 0.0
    %111 = vmatprep.mubr.f32.mxu0 0.0
    %112 = vmatmul.mubr.f32.gmra.mxu0 %v45
    %v113 = vpop.f32.mrf.mxu0
    %v114 = vadd.f32 0.0, %v113
    %v115 = vpop.f32.mrf.mxu0
    %116 = vdwg.mxu0
    %v117 = vmax.f32 %v114, 0.0
    %118 = vst [vmem:[#allocation7] sm:$0xff] %v117
    // Predicated region
    $region18: #{tpu_custom_call.1} parent=1 // pred_check
      _
    $region19: #{tpu_custom_call.1} parent=1 // pred_check_branch
      %120 = sbr.rel (0) target = $region21
    $region20: #{tpu_custom_call.1} parent=1 // pred_region
      %s122 = ssub.s32 128, 128
      %123 = vsyncadd [#allocation4], %s122
      %s125 = sshll.u32 [#allocation7], 4
      %s126 = int_to_ptr.vmem [resolvable:$true] %s125
      %128 = dma.vmem_to_hbm [thread:$0]  %s126, 128, %s2, [#allocation4]
    $region21: #{tpu_custom_call.1} parent=1 // pred_fallthru
      _
    // Predicated region
    $region22: #{tpu_custom_call.1} parent=1 // pred_check
      _
    $region23: #{tpu_custom_call.1} parent=1 // pred_check_branch
      %130 = sbr.rel (0) target = $region25
    $region24: #{tpu_custom_call.1} parent=1 // pred_region
      %131 = dma.done [#allocation4], 128
    $region25: #{tpu_custom_call.1} parent=1 // pred_fallthru
      _
    %132 = vsyncpa [#allocation3], 1
    %133 = vsyncpa [#allocation6], 1
    %134 = vsyncpa [#allocation4], 1

</llo_original>
